<compile_context>
chip_gen: v5e
topology: v5e:2x2
jax: 0.10.0
libtpu: 0.0.40
codegen_flags: <defaults>
</compile_context>

<pallas_src>
import math

import jax
import jax.numpy as jnp
from jax.experimental import pallas as pl
from jax.experimental.pallas import tpu as pltpu

NEG_SLOPE = 0.01       # torch.nn.LeakyReLU default (plain python float, not captured jnp)
NEG_BIG = -1e30
MAX_TILE_E = 512       # edge tile; comfortably inside v7x's 64 MiB VMEM even for large B


def _leaky_relu(x):
    return jnp.where(x > 0, x, NEG_SLOPE * x)


def _round_up(x, m):
    return ((x + m - 1) // m) * m


def _edge_agg_kernel(
    eb_row_ref,    # (1, TILE_E) int32  graph id per edge (lane layout), -1 = padding
    eb_col_ref,    # (TILE_E, 1) int32  same ids, sublane layout (for one-hot gather)
    edges_ref,     # (TILE_E, d_e) f32
    u_ref,         # (B, d_u) f32
    wqv_e_ref,     # (d_e, 2*d_attn)  fused [Wq_e*scale | Wv_e]
    wqv_u_ref,     # (d_u, 2*d_attn)  fused [Wq_u*scale | Wv_u]
    bqv_ref,       # (1, 2*d_attn)    fused [bq*scale | bv]
    wk_ref, bk_ref,    # key Dense, zero-padded to 2*d_attn output cols
    wl_ref, bl_ref,    # output Dense, weight zero-padded to 2*d_attn input rows
    out_ref,       # (B, d_e)
    k_sc,          # (B, 2*d_attn) scratch: [key | 0] vectors
    uqv_sc,        # (B, 2*d_attn) scratch: u-side Q|V pre-projections (+bias)
    m_sc,          # (B, 1)        running max
    l_sc,          # (B, 1)        running denominator
    acc_sc,        # (B, 2*d_attn) running (unnormalized) attn^T @ [q|v]
):
    step = pl.program_id(0)
    tile_e = edges_ref.shape[0]
    n_b = u_ref.shape[0]

    @pl.when(step == 0)
    def _init():
        u = u_ref[...]
        # Zero-padded key weights -> second half of k_sc is exactly 0.
        k_sc[...] = _leaky_relu(
            jnp.dot(u, wk_ref[...], preferred_element_type=jnp.float32) + bk_ref[...])
        uqv_sc[...] = (
            jnp.dot(u, wqv_u_ref[...], preferred_element_type=jnp.float32) + bqv_ref[...])
        m_sc[...] = jnp.full_like(m_sc, NEG_BIG)
        l_sc[...] = jnp.zeros_like(l_sc)
        acc_sc[...] = jnp.zeros_like(acc_sc)

    # ---- fused Q|V projection for this edge tile ---------------------------
    edges = edges_ref[...]                                       # (TILE_E, d_e)
    eb_col = eb_col_ref[...]                                     # (TILE_E, 1)
    cols = jax.lax.broadcasted_iota(jnp.int32, (tile_e, n_b), 1)
    gather = (eb_col == cols).astype(jnp.float32)                # one-hot; pad rows = 0
    qv = _leaky_relu(
        jnp.dot(edges, wqv_e_ref[...], preferred_element_type=jnp.float32)
        + jnp.dot(gather, uqv_sc[...], preferred_element_type=jnp.float32))
    # (TILE_E, 2*d_attn); 1/sqrt(d_attn) already folded into the query half.

    # ---- lane-dense (B, TILE_E) masked online softmax over edges -----------
    eb_row = eb_row_ref[...]                                     # (1, TILE_E)
    rows = jax.lax.broadcasted_iota(jnp.int32, (n_b, tile_e), 0)
    mask = rows == eb_row                                        # (B, TILE_E) bool

    # k_ext @ qv^T == k @ q^T (key half is zero beyond d_attn) -> no slicing.
    scores = jax.lax.dot_general(
        k_sc[...], qv, (((1,), (1,)), ((), ())),
        preferred_element_type=jnp.float32)                      # (B, TILE_E)
    scores = jnp.where(mask, scores, NEG_BIG)

    m_prev = m_sc[...]                                           # (B, 1)
    m_new = jnp.maximum(m_prev, jnp.max(scores, axis=1, keepdims=True))
    alpha = jnp.exp(m_prev - m_new)
    p = jnp.where(mask, jnp.exp(scores - m_new), 0.0)            # (B, TILE_E)

    l_sc[...] = alpha * l_sc[...] + jnp.sum(p, axis=1, keepdims=True)
    acc_sc[...] = alpha * acc_sc[...] + jnp.dot(
        p, qv, preferred_element_type=jnp.float32)               # (B, 2*d_attn)
    m_sc[...] = m_new

    @pl.when(step == pl.num_programs(0) - 1)
    def _finalize():
        denom = l_sc[...]
        denom = jnp.where(denom > 0.0, denom, 1.0)   # empty-graph guard (0 attention)
        x = acc_sc[...] / denom                      # deferred normalization
        # wl is zero-padded on its first d_attn rows, so the q-half of the
        # accumulator contributes nothing: x @ wl_ext == x_v @ wl.
        out_ref[...] = _leaky_relu(
            jnp.dot(x, wl_ref[...], preferred_element_type=jnp.float32) + bl_ref[...])


def edge_aggregate_global_head(nodes, edges, edge_index, u, batch, params):
    """Pallas wrapper.  Index gather / weight splitting & fusing stays in plain JAX."""
    del nodes  # unused by the module's forward
    wq, bq, wk, bk, wv, bv, wl, bl = params
    n_e, d_e = edges.shape
    n_b, d_u = u.shape
    d_attn = wk.shape[1]

    # edge -> graph id
    eb = batch[edge_index[0]].astype(jnp.int32)                  # (E,)

    # Fold 1/sqrt(d_attn) into the query weights (LeakyReLU is positively homogeneous).
    scale = 1.0 / math.sqrt(d_attn)
    wq_s = (wq * scale).astype(jnp.float32)
    bq_s = (bq * scale).astype(jnp.float32)

    # Split concatenated-input weights over [edges | u], fuse Q|V into one projection.
    wqv_e = jnp.concatenate([wq_s[:d_e], wv[:d_e].astype(jnp.float32)], axis=1)
    wqv_u = jnp.concatenate([wq_s[d_e:], wv[d_e:].astype(jnp.float32)], axis=1)
    bqv = jnp.concatenate([bq_s, bv.astype(jnp.float32)]).reshape(1, -1)

    # Zero-extend key weights to 2*d_attn output cols and the output Dense weight
    # to 2*d_attn input rows so the kernel never has to lane-slice the fused qv.
    zcol = jnp.zeros((d_u, d_attn), jnp.float32)
    wk_ext = jnp.concatenate([wk.astype(jnp.float32), zcol], axis=1)     # (d_u, 2*d_attn)
    bk_ext = jnp.concatenate(
        [bk.astype(jnp.float32), jnp.zeros((d_attn,), jnp.float32)]).reshape(1, -1)
    wl_ext = jnp.concatenate(
        [jnp.zeros((d_attn, d_e), jnp.float32), wl.astype(jnp.float32)], axis=0)
    bl_r = bl.reshape(1, -1).astype(jnp.float32)

    # Pad the edge axis to a lane-aligned tile multiple (padded edges get id -1).
    tile_e = min(MAX_TILE_E, _round_up(max(n_e, 1), 128))
    e_pad = _round_up(max(n_e, 1), tile_e)
    num_tiles = e_pad // tile_e
    pad = e_pad - n_e
    edges_p = jnp.pad(edges.astype(jnp.float32), ((0, pad), (0, 0)))
    eb_p = jnp.pad(eb, (0, pad), constant_values=-1)
    eb_row = eb_p.reshape(1, e_pad)
    eb_col = eb_p.reshape(e_pad, 1)

    operands = (
        eb_row, eb_col, edges_p, u.astype(jnp.float32),
        wqv_e, wqv_u, bqv,
        wk_ext, bk_ext, wl_ext, bl_r,
    )

    grid_spec = pltpu.PrefetchScalarGridSpec(
        num_scalar_prefetch=0,
        grid=(num_tiles,),
        in_specs=[
            pl.BlockSpec((1, tile_e), lambda i: (0, i)),             # eb_row
            pl.BlockSpec((tile_e, 1), lambda i: (i, 0)),             # eb_col
            pl.BlockSpec((tile_e, d_e), lambda i: (i, 0)),           # edges tile
            pl.BlockSpec((n_b, d_u), lambda i: (0, 0)),              # u
            pl.BlockSpec((d_e, 2 * d_attn), lambda i: (0, 0)),       # wqv_e
            pl.BlockSpec((d_u, 2 * d_attn), lambda i: (0, 0)),       # wqv_u
            pl.BlockSpec((1, 2 * d_attn), lambda i: (0, 0)),         # bqv
            pl.BlockSpec((d_u, 2 * d_attn), lambda i: (0, 0)),       # wk_ext
            pl.BlockSpec((1, 2 * d_attn), lambda i: (0, 0)),         # bk_ext
            pl.BlockSpec((2 * d_attn, d_e), lambda i: (0, 0)),       # wl_ext
            pl.BlockSpec((1, d_e), lambda i: (0, 0)),                # bl
        ],
        out_specs=pl.BlockSpec((n_b, d_e), lambda i: (0, 0)),
        scratch_shapes=[
            pltpu.VMEM((n_b, 2 * d_attn), jnp.float32),   # k_ext
            pltpu.VMEM((n_b, 2 * d_attn), jnp.float32),   # uqv
            pltpu.VMEM((n_b, 1), jnp.float32),            # m
            pltpu.VMEM((n_b, 1), jnp.float32),            # l
            pltpu.VMEM((n_b, 2 * d_attn), jnp.float32),   # acc
        ],
    )

    return pl.pallas_call(
        _edge_agg_kernel,
        out_shape=jax.ShapeDtypeStruct((n_b, d_e), jnp.float32),
        grid_spec=grid_spec,
        compiler_params=pltpu.CompilerParams(
            dimension_semantics=("arbitrary",)),
    )(*operands)


def reference_forward(nodes, edges, edge_index, u, batch, params):
    """Pure-JAX reference (mirrors the PyTorch forward)."""
    wq, bq, wk, bk, wv, bv, wl, bl = params
    s = edge_index[0]
    eb = batch[s]
    cat = jnp.concatenate([edges, u[eb]], axis=1)
    q = _leaky_relu(cat @ wq + bq)
    k = _leaky_relu(u @ wk + bk)
    v = _leaky_relu(cat @ wv + bv)
    scores = (q @ k.T) / jnp.sqrt(jnp.float32(wq.shape[1]))
    mask = eb[:, None] == jnp.arange(u.shape[0])[None, :]
    scores = jnp.where(mask, scores, NEG_BIG)
    attn = jax.nn.softmax(scores, axis=0)
    attn = jnp.where(mask, attn, 0.0)
    x = attn.T @ v
    return _leaky_relu(x @ wl + bl)


if __name__ == "__main__":
    # Small, module-consistent shapes.  Graph 2 intentionally has zero edges to
    # exercise the empty-graph guard.
    d_v, d_e, d_u, d_attn = 8, 16, 8, 32
    n_nodes, n_edges, n_batch = 12, 24, 3

    key = jax.random.PRNGKey(0)
    ks = jax.random.split(key, 16)

    nodes = jax.random.normal(ks[0], (n_nodes, d_v), jnp.float32)
    edges = jax.random.normal(ks[1], (n_edges, d_e), jnp.float32)
    u = jax.random.normal(ks[2], (n_batch, d_u), jnp.float32)
    # nodes 0..5 -> graph 0, nodes 6..11 -> graph 1 (graph 2 has no nodes/edges)
    batch = jnp.concatenate(
        [jnp.zeros(n_nodes // 2, jnp.int32), jnp.ones(n_nodes - n_nodes // 2, jnp.int32)]
    )
    # edges stay within a graph (source/target drawn from the same half)
    src0 = jax.random.randint(ks[3], (n_edges // 2,), 0, n_nodes // 2)
    dst0 = jax.random.randint(ks[4], (n_edges // 2,), 0, n_nodes // 2)
    src1 = jax.random.randint(ks[5], (n_edges // 2,), n_nodes // 2, n_nodes)
    dst1 = jax.random.randint(ks[6], (n_edges // 2,), n_nodes // 2, n_nodes)
    edge_index = jnp.stack(
        [jnp.concatenate([src0, src1]), jnp.concatenate([dst0, dst1])]
    ).astype(jnp.int32)

    def init(k, shape, scale=0.1):
        return scale * jax.random.normal(k, shape, jnp.float32)

    params = (
        init(ks[7], (d_e + d_u, d_attn)), init(ks[8], (d_attn,)),    # query
        init(ks[9], (d_u, d_attn)),       init(ks[10], (d_attn,)),   # key
        init(ks[11], (d_e + d_u, d_attn)), init(ks[12], (d_attn,)),  # value
        init(ks[13], (d_attn, d_e)),      init(ks[14], (d_e,)),      # lin
    )

    out = edge_aggregate_global_head(nodes, edges, edge_index, u, batch, params)
    out = jax.block_until_ready(out)

    ref = reference_forward(nodes, edges, edge_index, u, batch, params)
    assert out.shape == (n_batch, d_e), out.shape
    assert jnp.allclose(out, ref, atol=1e-4, rtol=1e-4), (out, ref)

    print("KERNEL_OK")
</pallas_src>

<mosaic_0001>
module attributes {stable_mosaic.version = 11 : i64} {
  func.func @_edge_agg_kernel(%arg0: i32, %arg1: memref<1x128xi32, #tpu.memory_space<vmem>>, %arg2: memref<128x1xi32, #tpu.memory_space<vmem>>, %arg3: memref<128x16xf32, #tpu.memory_space<vmem>>, %arg4: memref<3x8xf32, #tpu.memory_space<vmem>>, %arg5: memref<16x64xf32, #tpu.memory_space<vmem>>, %arg6: memref<8x64xf32, #tpu.memory_space<vmem>>, %arg7: memref<1x64xf32, #tpu.memory_space<vmem>>, %arg8: memref<8x64xf32, #tpu.memory_space<vmem>>, %arg9: memref<1x64xf32, #tpu.memory_space<vmem>>, %arg10: memref<64x16xf32, #tpu.memory_space<vmem>>, %arg11: memref<1x16xf32, #tpu.memory_space<vmem>>, %arg12: memref<3x16xf32, #tpu.memory_space<vmem>>, %arg13: memref<3x64xf32, #tpu.memory_space<vmem>>, %arg14: memref<3x64xf32, #tpu.memory_space<vmem>>, %arg15: memref<3x1xf32, #tpu.memory_space<vmem>>, %arg16: memref<3x1xf32, #tpu.memory_space<vmem>>, %arg17: memref<3x64xf32, #tpu.memory_space<vmem>>) attributes {dimension_semantics = [#tpu.dimension_semantics<arbitrary>], iteration_bounds = array<i64: 1>, scalar_prefetch = 0 : i64, scratch_operands = 5 : i64, tpu.core_type = #tpu.core_type<tc>, window_params = [{transform_indices = @transform_0, window_bounds = array<i64: 1, 128>}, {transform_indices = @transform_1, window_bounds = array<i64: 128, 1>}, {transform_indices = @transform_2, window_bounds = array<i64: 128, 16>}, {pipeline_mode = #tpu.pipeline_mode<synchronous>, transform_indices = @transform_3, window_bounds = array<i64: 3, 8>}, {pipeline_mode = #tpu.pipeline_mode<synchronous>, transform_indices = @transform_4, window_bounds = array<i64: 16, 64>}, {pipeline_mode = #tpu.pipeline_mode<synchronous>, transform_indices = @transform_5, window_bounds = array<i64: 8, 64>}, {pipeline_mode = #tpu.pipeline_mode<synchronous>, transform_indices = @transform_6, window_bounds = array<i64: 1, 64>}, {pipeline_mode = #tpu.pipeline_mode<synchronous>, transform_indices = @transform_7, window_bounds = array<i64: 8, 64>}, {pipeline_mode = #tpu.pipeline_mode<synchronous>, transform_indices = @transform_8, window_bounds = array<i64: 1, 64>}, {pipeline_mode = #tpu.pipeline_mode<synchronous>, transform_indices = @transform_9, window_bounds = array<i64: 64, 16>}, {pipeline_mode = #tpu.pipeline_mode<synchronous>, transform_indices = @transform_10, window_bounds = array<i64: 1, 16>}, {pipeline_mode = #tpu.pipeline_mode<synchronous>, transform_indices = @transform_11, window_bounds = array<i64: 3, 16>}]} {
    %c0_i32 = arith.constant 0 : i32
    %0 = arith.cmpi eq, %arg0, %c0_i32 : i32
    %1 = arith.extui %0 : i1 to i32
    %c0_i32_0 = arith.constant 0 : i32
    %2 = arith.cmpi ne, %1, %c0_i32_0 : i32
    scf.if %2 {
      %c0_35 = arith.constant 0 : index
      %c0_36 = arith.constant 0 : index
      %55 = vector.load %arg4[%c0_35, %c0_36] : memref<3x8xf32, #tpu.memory_space<vmem>>, vector<3x8xf32>
      %c0_37 = arith.constant 0 : index
      %c0_38 = arith.constant 0 : index
      %56 = vector.load %arg8[%c0_37, %c0_38] : memref<8x64xf32, #tpu.memory_space<vmem>>, vector<8x64xf32>
      %cst_39 = arith.constant dense<0.000000e+00> : vector<3x64xf32>
      %57 = tpu.matmul %55, %56, %cst_39 {dimension_numbers = #tpu.dot_dimension_numbers<[1], [0], [0], [1], [0, 0, 1, 1], [], []>} : vector<3x8xf32>, vector<8x64xf32>, vector<3x64xf32> -> vector<3x64xf32>
      %c0_40 = arith.constant 0 : index
      %c0_41 = arith.constant 0 : index
      %58 = vector.load %arg9[%c0_40, %c0_41] : memref<1x64xf32, #tpu.memory_space<vmem>>, vector<1x64xf32>
      %59 = vector.broadcast %58 : vector<1x64xf32> to vector<3x64xf32>
      %60 = arith.addf %57, %59 : vector<3x64xf32>
      %cst_42 = arith.constant 0.000000e+00 : f32
      %61 = vector.broadcast %cst_42 : f32 to vector<3x64xf32>
      %62 = arith.cmpf ogt, %60, %61 : vector<3x64xf32>
      %cst_43 = arith.constant 0.00999999977 : f32
      %63 = vector.broadcast %cst_43 : f32 to vector<3x64xf32>
      %64 = arith.mulf %63, %60 : vector<3x64xf32>
      %65 = arith.select %62, %60, %64 : vector<3x64xi1>, vector<3x64xf32>
      %c0_44 = arith.constant 0 : index
      %c0_45 = arith.constant 0 : index
      %66 = vector.load %arg13[%c0_44, %c0_45] : memref<3x64xf32, #tpu.memory_space<vmem>>, vector<3x64xf32>
      tpu.vector_store %arg13[%c0_44, %c0_45], %65 {strides = array<i32>} : memref<3x64xf32, #tpu.memory_space<vmem>>, vector<3x64xf32>,
      %c0_46 = arith.constant 0 : index
      %c0_47 = arith.constant 0 : index
      %67 = vector.load %arg6[%c0_46, %c0_47] : memref<8x64xf32, #tpu.memory_space<vmem>>, vector<8x64xf32>
      %cst_48 = arith.constant dense<0.000000e+00> : vector<3x64xf32>
      %68 = tpu.matmul %55, %67, %cst_48 {dimension_numbers = #tpu.dot_dimension_numbers<[1], [0], [0], [1], [0, 0, 1, 1], [], []>} : vector<3x8xf32>, vector<8x64xf32>, vector<3x64xf32> -> vector<3x64xf32>
      %c0_49 = arith.constant 0 : index
      %c0_50 = arith.constant 0 : index
      %69 = vector.load %arg7[%c0_49, %c0_50] : memref<1x64xf32, #tpu.memory_space<vmem>>, vector<1x64xf32>
      %70 = vector.broadcast %69 : vector<1x64xf32> to vector<3x64xf32>
      %71 = arith.addf %68, %70 : vector<3x64xf32>
      %c0_51 = arith.constant 0 : index
      %c0_52 = arith.constant 0 : index
      %72 = vector.load %arg14[%c0_51, %c0_52] : memref<3x64xf32, #tpu.memory_space<vmem>>, vector<3x64xf32>
      tpu.vector_store %arg14[%c0_51, %c0_52], %71 {strides = array<i32>} : memref<3x64xf32, #tpu.memory_space<vmem>>, vector<3x64xf32>,
      %cst_53 = arith.constant -1.000000e+30 : f32
      %73 = vector.broadcast %cst_53 : f32 to vector<3x1xf32>
      %c0_54 = arith.constant 0 : index
      %c0_55 = arith.constant 0 : index
      %74 = vector.load %arg15[%c0_54, %c0_55] : memref<3x1xf32, #tpu.memory_space<vmem>>, vector<3x1xf32>
      tpu.vector_store %arg15[%c0_54, %c0_55], %73 {strides = array<i32>} : memref<3x1xf32, #tpu.memory_space<vmem>>, vector<3x1xf32>,
      %cst_56 = arith.constant 0.000000e+00 : f32
      %75 = vector.broadcast %cst_56 : f32 to vector<3x1xf32>
      %c0_57 = arith.constant 0 : index
      %c0_58 = arith.constant 0 : index
      %76 = vector.load %arg16[%c0_57, %c0_58] : memref<3x1xf32, #tpu.memory_space<vmem>>, vector<3x1xf32>
      tpu.vector_store %arg16[%c0_57, %c0_58], %75 {strides = array<i32>} : memref<3x1xf32, #tpu.memory_space<vmem>>, vector<3x1xf32>,
      %cst_59 = arith.constant 0.000000e+00 : f32
      %77 = vector.broadcast %cst_59 : f32 to vector<3x64xf32>
      %c0_60 = arith.constant 0 : index
      %c0_61 = arith.constant 0 : index
      %78 = vector.load %arg17[%c0_60, %c0_61] : memref<3x64xf32, #tpu.memory_space<vmem>>, vector<3x64xf32>
      tpu.vector_store %arg17[%c0_60, %c0_61], %77 {strides = array<i32>} : memref<3x64xf32, #tpu.memory_space<vmem>>, vector<3x64xf32>,
    } else {
    }
    %c0 = arith.constant 0 : index
    %c0_1 = arith.constant 0 : index
    %3 = vector.load %arg3[%c0, %c0_1] : memref<128x16xf32, #tpu.memory_space<vmem>>, vector<128x16xf32>
    %c0_2 = arith.constant 0 : index
    %c0_3 = arith.constant 0 : index
    %4 = vector.load %arg2[%c0_2, %c0_3] : memref<128x1xi32, #tpu.memory_space<vmem>>, vector<128x1xi32>
    %5 = tpu.iota {dimensions = array<i32: 1>} : vector<128x3xi32>
    %6 = vector.broadcast %4 : vector<128x1xi32> to vector<128x3xi32>
    %7 = arith.cmpi eq, %6, %5 : vector<128x3xi32>
    %8 = arith.extui %7 : vector<128x3xi1> to vector<128x3xi32>
    %9 = arith.sitofp %8 : vector<128x3xi32> to vector<128x3xf32>
    %c0_4 = arith.constant 0 : index
    %c0_5 = arith.constant 0 : index
    %10 = vector.load %arg5[%c0_4, %c0_5] : memref<16x64xf32, #tpu.memory_space<vmem>>, vector<16x64xf32>
    %cst = arith.constant dense<0.000000e+00> : vector<128x64xf32>
    %11 = tpu.matmul %3, %10, %cst {dimension_numbers = #tpu.dot_dimension_numbers<[1], [0], [0], [1], [0, 0, 1, 1], [], []>} : vector<128x16xf32>, vector<16x64xf32>, vector<128x64xf32> -> vector<128x64xf32>
    %c0_6 = arith.constant 0 : index
    %c0_7 = arith.constant 0 : index
    %12 = vector.load %arg14[%c0_6, %c0_7] : memref<3x64xf32, #tpu.memory_space<vmem>>, vector<3x64xf32>
    %cst_8 = arith.constant dense<0.000000e+00> : vector<128x64xf32>
    %13 = tpu.matmul %9, %12, %cst_8 {dimension_numbers = #tpu.dot_dimension_numbers<[1], [0], [0], [1], [0, 0, 1, 1], [], []>} : vector<128x3xf32>, vector<3x64xf32>, vector<128x64xf32> -> vector<128x64xf32>
    %14 = arith.addf %11, %13 : vector<128x64xf32>
    %cst_9 = arith.constant 0.000000e+00 : f32
    %15 = vector.broadcast %cst_9 : f32 to vector<128x64xf32>
    %16 = arith.cmpf ogt, %14, %15 : vector<128x64xf32>
    %cst_10 = arith.constant 0.00999999977 : f32
    %17 = vector.broadcast %cst_10 : f32 to vector<128x64xf32>
    %18 = arith.mulf %17, %14 : vector<128x64xf32>
    %19 = arith.select %16, %14, %18 : vector<128x64xi1>, vector<128x64xf32>
    %c0_11 = arith.constant 0 : index
    %c0_12 = arith.constant 0 : index
    %20 = vector.load %arg1[%c0_11, %c0_12] : memref<1x128xi32, #tpu.memory_space<vmem>>, vector<1x128xi32>
    %21 = tpu.iota {dimensions = array<i32: 0>} : vector<3x128xi32>
    %22 = vector.broadcast %20 : vector<1x128xi32> to vector<3x128xi32>
    %23 = arith.cmpi eq, %21, %22 : vector<3x128xi32>
    %c0_13 = arith.constant 0 : index
    %c0_14 = arith.constant 0 : index
    %24 = vector.load %arg13[%c0_13, %c0_14] : memref<3x64xf32, #tpu.memory_space<vmem>>, vector<3x64xf32>
    %cst_15 = arith.constant dense<0.000000e+00> : vector<3x128xf32>
    %25 = tpu.matmul %24, %19, %cst_15 {dimension_numbers = #tpu.dot_dimension_numbers<[1], [1], [0], [0], [0, 0, 1, 0], [], []>} : vector<3x64xf32>, vector<128x64xf32>, vector<3x128xf32> -> vector<3x128xf32>
    %cst_16 = arith.constant -1.000000e+30 : f32
    %26 = vector.broadcast %cst_16 : f32 to vector<3x128xf32>
    %27 = arith.select %23, %25, %26 : vector<3x128xi1>, vector<3x128xf32>
    %c0_17 = arith.constant 0 : index
    %c0_18 = arith.constant 0 : index
    %28 = vector.load %arg15[%c0_17, %c0_18] : memref<3x1xf32, #tpu.memory_space<vmem>>, vector<3x1xf32>
    %cst_19 = arith.constant dense<0xFF800000> : vector<3xf32>
    %29 = vector.multi_reduction <maximumf>, %27, %cst_19 [1] : vector<3x128xf32> to vector<3xf32>
    %30 = vector.shape_cast %29 : vector<3xf32> to vector<3x1xf32>
    %31 = arith.maximumf %28, %30 : vector<3x1xf32>
    %32 = arith.subf %28, %31 : vector<3x1xf32>
    %33 = math.exp %32 : vector<3x1xf32>
    %34 = vector.broadcast %31 : vector<3x1xf32> to vector<3x128xf32>
    %35 = arith.subf %27, %34 : vector<3x128xf32>
    %36 = math.exp %35 : vector<3x128xf32>
    %cst_20 = arith.constant 0.000000e+00 : f32
    %37 = vector.broadcast %cst_20 : f32 to vector<3x128xf32>
    %38 = arith.select %23, %36, %37 : vector<3x128xi1>, vector<3x128xf32>
    %c0_21 = arith.constant 0 : index
    %c0_22 = arith.constant 0 : index
    %39 = vector.load %arg16[%c0_21, %c0_22] : memref<3x1xf32, #tpu.memory_space<vmem>>, vector<3x1xf32>
    %40 = arith.mulf %33, %39 : vector<3x1xf32>
    %cst_23 = arith.constant dense<0.000000e+00> : vector<3xf32>
    %41 = vector.multi_reduction <add>, %38, %cst_23 [1] : vector<3x128xf32> to vector<3xf32>
    %42 = vector.shape_cast %41 : vector<3xf32> to vector<3x1xf32>
    %43 = arith.addf %40, %42 : vector<3x1xf32>
    %c0_24 = arith.constant 0 : index
    %c0_25 = arith.constant 0 : index
    %44 = vector.load %arg16[%c0_24, %c0_25] : memref<3x1xf32, #tpu.memory_space<vmem>>, vector<3x1xf32>
    tpu.vector_store %arg16[%c0_24, %c0_25], %43 {strides = array<i32>} : memref<3x1xf32, #tpu.memory_space<vmem>>, vector<3x1xf32>,
    %c0_26 = arith.constant 0 : index
    %c0_27 = arith.constant 0 : index
    %45 = vector.load %arg17[%c0_26, %c0_27] : memref<3x64xf32, #tpu.memory_space<vmem>>, vector<3x64xf32>
    %46 = vector.broadcast %33 : vector<3x1xf32> to vector<3x64xf32>
    %47 = arith.mulf %46, %45 : vector<3x64xf32>
    %cst_28 = arith.constant dense<0.000000e+00> : vector<3x64xf32>
    %48 = tpu.matmul %38, %19, %cst_28 {dimension_numbers = #tpu.dot_dimension_numbers<[1], [0], [0], [1], [0, 0, 1, 1], [], []>} : vector<3x128xf32>, vector<128x64xf32>, vector<3x64xf32> -> vector<3x64xf32>
    %49 = arith.addf %47, %48 : vector<3x64xf32>
    %c0_29 = arith.constant 0 : index
    %c0_30 = arith.constant 0 : index
    %50 = vector.load %arg17[%c0_29, %c0_30] : memref<3x64xf32, #tpu.memory_space<vmem>>, vector<3x64xf32>
    tpu.vector_store %arg17[%c0_29, %c0_30], %49 {strides = array<i32>} : memref<3x64xf32, #tpu.memory_space<vmem>>, vector<3x64xf32>,
    %c0_31 = arith.constant 0 : index
    %c0_32 = arith.constant 0 : index
    %51 = vector.load %arg15[%c0_31, %c0_32] : memref<3x1xf32, #tpu.memory_space<vmem>>, vector<3x1xf32>
    tpu.vector_store %arg15[%c0_31, %c0_32], %31 {strides = array<i32>} : memref<3x1xf32, #tpu.memory_space<vmem>>, vector<3x1xf32>,
    %c0_i32_33 = arith.constant 0 : i32
    %52 = arith.cmpi eq, %arg0, %c0_i32_33 : i32
    %53 = arith.extui %52 : i1 to i32
    %c0_i32_34 = arith.constant 0 : i32
    %54 = arith.cmpi ne, %53, %c0_i32_34 : i32
    scf.if %54 {
      %c0_35 = arith.constant 0 : index
      %c0_36 = arith.constant 0 : index
      %55 = vector.load %arg16[%c0_35, %c0_36] : memref<3x1xf32, #tpu.memory_space<vmem>>, vector<3x1xf32>
      %cst_37 = arith.constant 0.000000e+00 : f32
      %56 = vector.broadcast %cst_37 : f32 to vector<3x1xf32>
      %57 = arith.cmpf ogt, %55, %56 : vector<3x1xf32>
      %cst_38 = arith.constant 1.000000e+00 : f32
      %58 = vector.broadcast %cst_38 : f32 to vector<3x1xf32>
      %59 = arith.select %57, %55, %58 : vector<3x1xi1>, vector<3x1xf32>
      %c0_39 = arith.constant 0 : index
      %c0_40 = arith.constant 0 : index
      %60 = vector.load %arg17[%c0_39, %c0_40] : memref<3x64xf32, #tpu.memory_space<vmem>>, vector<3x64xf32>
      %61 = vector.broadcast %59 : vector<3x1xf32> to vector<3x64xf32>
      %62 = arith.divf %60, %61 : vector<3x64xf32>
      %c0_41 = arith.constant 0 : index
      %c0_42 = arith.constant 0 : index
      %63 = vector.load %arg10[%c0_41, %c0_42] : memref<64x16xf32, #tpu.memory_space<vmem>>, vector<64x16xf32>
      %cst_43 = arith.constant dense<0.000000e+00> : vector<3x16xf32>
      %64 = tpu.matmul %62, %63, %cst_43 {dimension_numbers = #tpu.dot_dimension_numbers<[1], [0], [0], [1], [0, 0, 1, 1], [], []>} : vector<3x64xf32>, vector<64x16xf32>, vector<3x16xf32> -> vector<3x16xf32>
      %c0_44 = arith.constant 0 : index
      %c0_45 = arith.constant 0 : index
      %65 = vector.load %arg11[%c0_44, %c0_45] : memref<1x16xf32, #tpu.memory_space<vmem>>, vector<1x16xf32>
      %66 = vector.broadcast %65 : vector<1x16xf32> to vector<3x16xf32>
      %67 = arith.addf %64, %66 : vector<3x16xf32>
      %cst_46 = arith.constant 0.000000e+00 : f32
      %68 = vector.broadcast %cst_46 : f32 to vector<3x16xf32>
      %69 = arith.cmpf ogt, %67, %68 : vector<3x16xf32>
      %cst_47 = arith.constant 0.00999999977 : f32
      %70 = vector.broadcast %cst_47 : f32 to vector<3x16xf32>
      %71 = arith.mulf %70, %67 : vector<3x16xf32>
      %72 = arith.select %69, %67, %71 : vector<3x16xi1>, vector<3x16xf32>
      %c0_48 = arith.constant 0 : index
      %c0_49 = arith.constant 0 : index
      %73 = vector.load %arg12[%c0_48, %c0_49] : memref<3x16xf32, #tpu.memory_space<vmem>>, vector<3x16xf32>
      tpu.vector_store %arg12[%c0_48, %c0_49], %72 {strides = array<i32>} : memref<3x16xf32, #tpu.memory_space<vmem>>, vector<3x16xf32>,
    } else {
    }
    return
  }
  func.func @transform_0(%arg0: i32) -> (i32, i32) {
    %c0_i32 = arith.constant 0 : i32
    %c0_i32_0 = arith.constant 0 : i32
    return %c0_i32, %arg0 : i32, i32
  }
  func.func @transform_1(%arg0: i32) -> (i32, i32) {
    %c0_i32 = arith.constant 0 : i32
    %c0_i32_0 = arith.constant 0 : i32
    return %arg0, %c0_i32 : i32, i32
  }
  func.func @transform_2(%arg0: i32) -> (i32, i32) {
    %c0_i32 = arith.constant 0 : i32
    %c0_i32_0 = arith.constant 0 : i32
    return %arg0, %c0_i32 : i32, i32
  }
  func.func @transform_3(%arg0: i32) -> (i32, i32) {
    %c0_i32 = arith.constant 0 : i32
    %c0_i32_0 = arith.constant 0 : i32
    %c0_i32_1 = arith.constant 0 : i32
    return %c0_i32, %c0_i32_0 : i32, i32
  }
  func.func @transform_4(%arg0: i32) -> (i32, i32) {
    %c0_i32 = arith.constant 0 : i32
    %c0_i32_0 = arith.constant 0 : i32
    %c0_i32_1 = arith.constant 0 : i32
    return %c0_i32, %c0_i32_0 : i32, i32
  }
  func.func @transform_5(%arg0: i32) -> (i32, i32) {
    %c0_i32 = arith.constant 0 : i32
    %c0_i32_0 = arith.constant 0 : i32
    %c0_i32_1 = arith.constant 0 : i32
    return %c0_i32, %c0_i32_0 : i32, i32
  }
  func.func @transform_6(%arg0: i32) -> (i32, i32) {
    %c0_i32 = arith.constant 0 : i32
    %c0_i32_0 = arith.constant 0 : i32
    %c0_i32_1 = arith.constant 0 : i32
    return %c0_i32, %c0_i32_0 : i32, i32
  }
  func.func @transform_7(%arg0: i32) -> (i32, i32) {
    %c0_i32 = arith.constant 0 : i32
    %c0_i32_0 = arith.constant 0 : i32
    %c0_i32_1 = arith.constant 0 : i32
    return %c0_i32, %c0_i32_0 : i32, i32
  }
  func.func @transform_8(%arg0: i32) -> (i32, i32) {
    %c0_i32 = arith.constant 0 : i32
    %c0_i32_0 = arith.constant 0 : i32
    %c0_i32_1 = arith.constant 0 : i32
    return %c0_i32, %c0_i32_0 : i32, i32
  }
  func.func @transform_9(%arg0: i32) -> (i32, i32) {
    %c0_i32 = arith.constant 0 : i32
    %c0_i32_0 = arith.constant 0 : i32
    %c0_i32_1 = arith.constant 0 : i32
    return %c0_i32, %c0_i32_0 : i32, i32
  }
  func.func @transform_10(%arg0: i32) -> (i32, i32) {
    %c0_i32 = arith.constant 0 : i32
    %c0_i32_0 = arith.constant 0 : i32
    %c0_i32_1 = arith.constant 0 : i32
    return %c0_i32, %c0_i32_0 : i32, i32
  }
  func.func @transform_11(%arg0: i32) -> (i32, i32) {
    %c0_i32 = arith.constant 0 : i32
    %c0_i32_0 = arith.constant 0 : i32
    %c0_i32_1 = arith.constant 0 : i32
    return %c0_i32, %c0_i32_0 : i32, i32
  }
}

</mosaic_0001>

<llo_original>
// kernel: tpu_custom_call.1
$region0: #{tpu_custom_call.1}
  #allocation0 [shape = 'u32[]', space=smem, size = 0x4, offset = 0x4, fixed_abs, tag = 'smem constant byte address 0x4 - core index']
  #allocation1 [shape = 'u32[72,128]{1,0:T(1,128)}', space=vmem, size = 0x9000, scoped, tag = 'internal scratch']
  #allocation2 [shape = 'f32[3,64]{1,0:T(4,128)}', space=vmem, size = 0x800, scoped, tag = 'scratch operand']
  #allocation3 [shape = 'f32[3,64]{1,0:T(4,128)}', space=vmem, size = 0x800, scoped, tag = 'scratch operand']
  #allocation4 [shape = 'f32[3,1]{1,0:T(4,128)}', space=vmem, size = 0x800, scoped, tag = 'scratch operand']
  #allocation5 [shape = 'f32[3,1]{1,0:T(4,128)}', space=vmem, size = 0x800, scoped, tag = 'scratch operand']
  #allocation6 [shape = 'f32[3,64]{1,0:T(4,128)}', space=vmem, size = 0x800, scoped, tag = 'scratch operand']
  %s0 = inlined_call_operand.vmem [shape: s32[1,128], index: 0, kind: input, shape index: {}]
  %s1 = inlined_call_operand.vmem [shape: s32[128,1], index: 1, kind: input, shape index: {}]
  %s2 = inlined_call_operand.vmem [shape: f32[128,16], index: 2, kind: input, shape index: {}]
  %s3 = inlined_call_operand.vmem [shape: f32[3,8], index: 3, kind: input, shape index: {}]
  %s4 = inlined_call_operand.vmem [shape: f32[16,64], index: 4, kind: input, shape index: {}]
  %s5 = inlined_call_operand.vmem [shape: f32[8,64], index: 5, kind: input, shape index: {}]
  %s6 = inlined_call_operand.vmem [shape: f32[1,64], index: 6, kind: input, shape index: {}]
  %s7 = inlined_call_operand.vmem [shape: f32[8,64], index: 7, kind: input, shape index: {}]
  %s8 = inlined_call_operand.vmem [shape: f32[1,64], index: 8, kind: input, shape index: {}]
  %s9 = inlined_call_operand.vmem [shape: f32[64,16], index: 9, kind: input, shape index: {}]
  %s10 = inlined_call_operand.vmem [shape: f32[1,16], index: 10, kind: input, shape index: {}]
  %s11 = inlined_call_operand.hbm [shape: f32[3,16], index: 11, kind: output, shape index: {}]
  %s12 = sld [smem:[#allocation0]]
  $region62: #{tpu_custom_call.1} parent=0
    _
  %s14 = ssub.s32 1, %s12
  %s15 = scalar_select 0, %s14, %s12
  $region1: #{tpu_custom_call.1} parent=0
    #allocation7 [shape = 'u8[2048]{0}', space=vmem, size = 0x800, scoped, tag = 'output window, operand 0, single buffered']
    #allocation8 [shape = 's32[1]{0}', space=sflag, size = 0x4, scoped, tag = 'scoped memory for tpu_custom_call.1']
    %16 = vsyncpa [#allocation8], 0
    // Predicated region
    $region2: #{tpu_custom_call.1} parent=1 // pred_check
      _
    $region3: #{tpu_custom_call.1} parent=1 // pred_check_branch
      %18 = sbr.rel (0) target = $region5
    $region4: #{tpu_custom_call.1} parent=1 // pred_region
      _
    $region5: #{tpu_custom_call.1} parent=1 // pred_fallthru
      _
    // Predicated region
    $region6: #{tpu_custom_call.1} parent=1 // pred_check
      _
    $region7: #{tpu_custom_call.1} parent=1 // pred_check_branch
      %20 = sbr.rel (0) target = $region9
    $region8: #{tpu_custom_call.1} parent=1 // pred_region
      _
    $region9: #{tpu_custom_call.1} parent=1 // pred_fallthru
      _
    // Predicated region
    $region10: #{tpu_custom_call.1} parent=1 // pred_check
      _
    $region11: #{tpu_custom_call.1} parent=1 // pred_check_branch
      %22 = sbr.rel (0) target = $region13
    $region12: #{tpu_custom_call.1} parent=1 // pred_region
      _
    $region13: #{tpu_custom_call.1} parent=1 // pred_fallthru
      _
    // Predicated region
    $region14: #{tpu_custom_call.1} parent=1 // pred_check
      _
    $region15: #{tpu_custom_call.1} parent=1 // pred_check_branch
      %24 = sbr.rel (0) target = $region17
    $region16: #{tpu_custom_call.1} parent=1 // pred_region
      _
    $region17: #{tpu_custom_call.1} parent=1 // pred_fallthru
      _
    // Predicated region
    $region18: #{tpu_custom_call.1} parent=1 // pred_check
      _
    $region19: #{tpu_custom_call.1} parent=1 // pred_check_branch
      %26 = sbr.rel (0) target = $region21
    $region20: #{tpu_custom_call.1} parent=1 // pred_region
      _
    $region21: #{tpu_custom_call.1} parent=1 // pred_fallthru
      _
    // Predicated region
    $region22: #{tpu_custom_call.1} parent=1 // pred_check
      _
    $region23: #{tpu_custom_call.1} parent=1 // pred_check_branch
      %28 = sbr.rel (0) target = $region25
    $region24: #{tpu_custom_call.1} parent=1 // pred_region
      _
    $region25: #{tpu_custom_call.1} parent=1 // pred_fallthru
      _
    // Predicated region
    $region26: #{tpu_custom_call.1} parent=1 // pred_check
      _
    $region27: #{tpu_custom_call.1} parent=1 // pred_check_branch
      %30 = sbr.rel (0) target = $region29
    $region28: #{tpu_custom_call.1} parent=1 // pred_region
      _
    $region29: #{tpu_custom_call.1} parent=1 // pred_fallthru
      _
    // Predicated region
    $region30: #{tpu_custom_call.1} parent=1 // pred_check
      _
    $region31: #{tpu_custom_call.1} parent=1 // pred_check_branch
      %32 = sbr.rel (0) target = $region33
    $region32: #{tpu_custom_call.1} parent=1 // pred_region
      _
    $region33: #{tpu_custom_call.1} parent=1 // pred_fallthru
      _
    // Predicated region
    $region34: #{tpu_custom_call.1} parent=1 // pred_check
      _
    $region35: #{tpu_custom_call.1} parent=1 // pred_check_branch
      %34 = sbr.rel (0) target = $region37
    $region36: #{tpu_custom_call.1} parent=1 // pred_region
      _
    $region37: #{tpu_custom_call.1} parent=1 // pred_fallthru
      _
    // Predicated region
    $region38: #{tpu_custom_call.1} parent=1 // pred_check
      _
    $region39: #{tpu_custom_call.1} parent=1 // pred_check_branch
      %36 = sbr.rel (0) target = $region41
    $region40: #{tpu_custom_call.1} parent=1 // pred_region
      _
    $region41: #{tpu_custom_call.1} parent=1 // pred_fallthru
      _
    // Predicated region
    $region42: #{tpu_custom_call.1} parent=1 // pred_check
      _
    $region43: #{tpu_custom_call.1} parent=1 // pred_check_branch
      %38 = sbr.rel (0) target = $region45
    $region44: #{tpu_custom_call.1} parent=1 // pred_region
      _
    $region45: #{tpu_custom_call.1} parent=1 // pred_fallthru
      _
    %p39 = scmp.eq.s32.totalorder 0, 0
    // Predicated region
    $region46: #{tpu_custom_call.1} parent=1 // pred_check
      %p40 = pneg %p39
    $region47: #{tpu_custom_call.1} parent=1 // pred_check_branch
      %42 = sbr.rel (%p40) target = $region49
    $region48: #{tpu_custom_call.1} parent=1 // pred_region
      %v43 = vld [vmem:[%s3] sm:$0x7]
      %v44 = vld [vmem:[%s7] sm:$0xff]
      %v45 = vld [vmem:[%s8] sm:$0x1]
      %v47 = vperm.slane %v45, 0
      %vm49 = vcmask 64512
      %v51 = vsel %vm49, %v43, 0
      %53 = vmatpush.msra.mxu0 0.0
      %54 = vmatpush.msra.mxu0 0.0
      %55 = vmatpush.msra.mxu0 0.0
      %56 = vmatpush.msra.mxu0 0.0
      %57 = vmatpush.msra.mxu0 0.0
      %58 = vmatpush.msra.mxu0 0.0
      %59 = vmatpush.msra.mxu0 0.0
      %60 = vmatpush.msra.mxu0 0.0
      %61 = vmatpush.msra.mxu0 0.0
      %62 = vmatpush.msra.mxu0 0.0
      %63 = vmatpush.msra.mxu0 0.0
      %64 = vmatpush.msra.mxu0 0.0
      %65 = vmatpush.msra.mxu0 0.0
      %66 = vmatpush.msra.mxu0 0.0
      %67 = vmatpush.msra.mxu0 0.0
      %68 = vmatpush.msra.mxu0 %v44
      %69 = vmatmul.f32.gmra.mxu0 %v51
      %v70 = vpop.f32.mrf.mxu0
      %v71 = vadd.f32 %v47, %v70
      %72 = vdwg.mxu0
      %vm73 = vcmp.gt.f32.partialorder %v71, 0.0
      %v74 = vmul.f32 %v71, 0.01
      %v75 = vsel %vm73, %v71, %v74
      %vm76 = vcmask 518144
      %77 = vst.msk [vmem:[#allocation2] sm:$0x7] %vm76, %v75
      %v78 = vld [vmem:[%s5] sm:$0xff]
      %v79 = vld [vmem:[%s6] sm:$0x1]
      %v81 = vperm.slane %v79, 0
      %83 = vmatpush.msra.mxu0 0.0
      %84 = vmatpush.msra.mxu0 0.0
      %85 = vmatpush.msra.mxu0 0.0
      %86 = vmatpush.msra.mxu0 0.0
      %87 = vmatpush.msra.mxu0 0.0
      %88 = vmatpush.msra.mxu0 0.0
      %89 = vmatpush.msra.mxu0 0.0
      %90 = vmatpush.msra.mxu0 0.0
      %91 = vmatpush.msra.mxu0 0.0
      %92 = vmatpush.msra.mxu0 0.0
      %93 = vmatpush.msra.mxu0 0.0
      %94 = vmatpush.msra.mxu0 0.0
      %95 = vmatpush.msra.mxu0 0.0
      %96 = vmatpush.msra.mxu0 0.0
      %97 = vmatpush.msra.mxu0 0.0
      %98 = vmatpush.msra.mxu0 %v78
      %99 = vmatmul.f32.gmra.mxu0 %v51
      %v100 = vpop.f32.mrf.mxu0
      %v101 = vadd.f32 %v81, %v100
      %102 = vdwg.mxu0
      %103 = vst.msk [vmem:[#allocation3] sm:$0x7] %vm76, %v101
      %vm104 = vcmask 2048
      %105 = vst.msk [vmem:[#allocation4] sm:$0x7] %vm104, -1e+30
      %106 = vst.msk [vmem:[#allocation5] sm:$0x7] %vm104, 0.0
      %107 = vst.msk [vmem:[#allocation6] sm:$0x7] %vm76, 0.0
    $region49: #{tpu_custom_call.1} parent=1 // pred_fallthru
      _
    %v108 = vld [vmem:[%s2] sm:$0xff]
    %v109 = vld [vmem:[%s2 + $0x8] sm:$0xff]
    %v110 = vld [vmem:[%s2 + $0x10] sm:$0xff]
    %v111 = vld [vmem:[%s2 + $0x18] sm:$0xff]
    %v112 = vld [vmem:[%s2 + $0x20] sm:$0xff]
    %v113 = vld [vmem:[%s2 + $0x28] sm:$0xff]
    %v114 = vld [vmem:[%s2 + $0x30] sm:$0xff]
    %v115 = vld [vmem:[%s2 + $0x38] sm:$0xff]
    %v116 = vld [vmem:[%s2 + $0x40] sm:$0xff]
    %v117 = vld [vmem:[%s2 + $0x48] sm:$0xff]
    %v118 = vld [vmem:[%s2 + $0x50] sm:$0xff]
    %v119 = vld [vmem:[%s2 + $0x58] sm:$0xff]
    %v120 = vld [vmem:[%s2 + $0x60] sm:$0xff]
    %v121 = vld [vmem:[%s2 + $0x68] sm:$0xff]
    %v122 = vld [vmem:[%s2 + $0x70] sm:$0xff]
    %v123 = vld [vmem:[%s2 + $0x78] sm:$0xff]
    %v124 = vld [vmem:[%s1] sm:$0xff]
    %v125 = vld [vmem:[%s1 + $0x8] sm:$0xff]
    %v126 = vld [vmem:[%s1 + $0x10] sm:$0xff]
    %v127 = vld [vmem:[%s1 + $0x18] sm:$0xff]
    %v128 = vld [vmem:[%s1 + $0x20] sm:$0xff]
    %v129 = vld [vmem:[%s1 + $0x28] sm:$0xff]
    %v130 = vld [vmem:[%s1 + $0x30] sm:$0xff]
    %v131 = vld [vmem:[%s1 + $0x38] sm:$0xff]
    %v132 = vld [vmem:[%s1 + $0x40] sm:$0xff]
    %v133 = vld [vmem:[%s1 + $0x48] sm:$0xff]
    %v134 = vld [vmem:[%s1 + $0x50] sm:$0xff]
    %v135 = vld [vmem:[%s1 + $0x58] sm:$0xff]
    %v136 = vld [vmem:[%s1 + $0x60] sm:$0xff]
    %v137 = vld [vmem:[%s1 + $0x68] sm:$0xff]
    %v138 = vld [vmem:[%s1 + $0x70] sm:$0xff]
    %v139 = vld [vmem:[%s1 + $0x78] sm:$0xff]
    %v140 = vlaneseq
    %v141 = vand.u32 %v140, 127
    %142 = vset.pattern.permute.xlu0 0
    %143 = vperm.xlu0 %142, %v124
    %v144 = vpop.permute.xlu0 %143
    %145 = vset.pattern.permute.xlu0 0
    %146 = vperm.xlu0 %145, %v125
    %v147 = vpop.permute.xlu0 %146
    %148 = vset.pattern.permute.xlu0 0
    %149 = vperm.xlu0 %148, %v126
    %v150 = vpop.permute.xlu0 %149
    %151 = vset.pattern.permute.xlu0 0
    %152 = vperm.xlu0 %151, %v127
    %v153 = vpop.permute.xlu0 %152
    %154 = vset.pattern.permute.xlu0 0
    %155 = vperm.xlu0 %154, %v128
    %v156 = vpop.permute.xlu0 %155
    %157 = vset.pattern.permute.xlu0 0
    %158 = vperm.xlu0 %157, %v129
    %v159 = vpop.permute.xlu0 %158
    %160 = vset.pattern.permute.xlu0 0
    %161 = vperm.xlu0 %160, %v130
    %v162 = vpop.permute.xlu0 %161
    %163 = vset.pattern.permute.xlu0 0
    %164 = vperm.xlu0 %163, %v131
    %v165 = vpop.permute.xlu0 %164
    %166 = vset.pattern.permute.xlu0 0
    %167 = vperm.xlu0 %166, %v132
    %v168 = vpop.permute.xlu0 %167
    %169 = vset.pattern.permute.xlu0 0
    %170 = vperm.xlu0 %169, %v133
    %v171 = vpop.permute.xlu0 %170
    %172 = vset.pattern.permute.xlu0 0
    %173 = vperm.xlu0 %172, %v134
    %v174 = vpop.permute.xlu0 %173
    %175 = vset.pattern.permute.xlu0 0
    %176 = vperm.xlu0 %175, %v135
    %v177 = vpop.permute.xlu0 %176
    %178 = vset.pattern.permute.xlu0 0
    %179 = vperm.xlu0 %178, %v136
    %v180 = vpop.permute.xlu0 %179
    %181 = vset.pattern.permute.xlu0 0
    %182 = vperm.xlu0 %181, %v137
    %v183 = vpop.permute.xlu0 %182
    %184 = vset.pattern.permute.xlu0 0
    %185 = vperm.xlu0 %184, %v138
    %v186 = vpop.permute.xlu0 %185
    %187 = vset.pattern.permute.xlu0 0
    %188 = vperm.xlu0 %187, %v139
    %v189 = vpop.permute.xlu0 %188
    %vm190 = vcmp.eq.s32.totalorder %v144, %v141
    %vm191 = vcmp.eq.s32.totalorder %v147, %v141
    %vm192 = vcmp.eq.s32.totalorder %v150, %v141
    %vm193 = vcmp.eq.s32.totalorder %v153, %v141
    %vm194 = vcmp.eq.s32.totalorder %v156, %v141
    %vm195 = vcmp.eq.s32.totalorder %v159, %v141
    %vm196 = vcmp.eq.s32.totalorder %v162, %v141
    %vm197 = vcmp.eq.s32.totalorder %v165, %v141
    %vm198 = vcmp.eq.s32.totalorder %v168, %v141
    %vm199 = vcmp.eq.s32.totalorder %v171, %v141
    %vm200 = vcmp.eq.s32.totalorder %v174, %v141
    %vm201 = vcmp.eq.s32.totalorder %v177, %v141
    %vm202 = vcmp.eq.s32.totalorder %v180, %v141
    %vm203 = vcmp.eq.s32.totalorder %v183, %v141
    %vm204 = vcmp.eq.s32.totalorder %v186, %v141
    %vm205 = vcmp.eq.s32.totalorder %v189, %v141
    %v206 = vsel %vm190, 1, 0
    %v207 = vsel %vm191, 1, 0
    %v208 = vsel %vm192, 1, 0
    %v209 = vsel %vm193, 1, 0
    %v210 = vsel %vm194, 1, 0
    %v211 = vsel %vm195, 1, 0
    %v212 = vsel %vm196, 1, 0
    %v213 = vsel %vm197, 1, 0
    %v214 = vsel %vm198, 1, 0
    %v215 = vsel %vm199, 1, 0
    %v216 = vsel %vm200, 1, 0
    %v217 = vsel %vm201, 1, 0
    %v218 = vsel %vm202, 1, 0
    %v219 = vsel %vm203, 1, 0
    %v220 = vsel %vm204, 1, 0
    %v221 = vsel %vm205, 1, 0
    %v222 = vcvt.s32.f32 %v206
    %v223 = vcvt.s32.f32 %v207
    %v224 = vcvt.s32.f32 %v208
    %v225 = vcvt.s32.f32 %v209
    %v226 = vcvt.s32.f32 %v210
    %v227 = vcvt.s32.f32 %v211
    %v228 = vcvt.s32.f32 %v212
    %v229 = vcvt.s32.f32 %v213
    %v230 = vcvt.s32.f32 %v214
    %v231 = vcvt.s32.f32 %v215
    %v232 = vcvt.s32.f32 %v216
    %v233 = vcvt.s32.f32 %v217
    %v234 = vcvt.s32.f32 %v218
    %v235 = vcvt.s32.f32 %v219
    %v236 = vcvt.s32.f32 %v220
    %v237 = vcvt.s32.f32 %v221
    %v238 = vld [vmem:[%s4] sm:$0xff]
    %v239 = vld [vmem:[%s4 + $0x8] sm:$0xff]
    %v240 = vld [vmem:[#allocation3] sm:$0x7]
    %vm241 = vcmask 23552
    %v243 = vsel %vm241, %v222, 0
    %v246 = vsel %vm241, %v223, 0
    %v249 = vsel %vm241, %v224, 0
    %v252 = vsel %vm241, %v225, 0
    %v255 = vsel %vm241, %v226, 0
    %v258 = vsel %vm241, %v227, 0
    %v261 = vsel %vm241, %v228, 0
    %v264 = vsel %vm241, %v229, 0
    %v267 = vsel %vm241, %v230, 0
    %v270 = vsel %vm241, %v231, 0
    %v273 = vsel %vm241, %v232, 0
    %v276 = vsel %vm241, %v233, 0
    %v279 = vsel %vm241, %v234, 0
    %v282 = vsel %vm241, %v235, 0
    %v285 = vsel %vm241, %v236, 0
    %v288 = vsel %vm241, %v237, 0
    %vm290 = vcmask 1042432
    %v292 = vsel %vm290, %v240, 0
    %294 = vmatpush.msra.mxu0 0.0
    %295 = vmatpush.msra.mxu0 0.0
    %296 = vmatpush.msra.mxu0 0.0
    %297 = vmatpush.msra.mxu0 0.0
    %298 = vmatpush.msra.mxu0 0.0
    %299 = vmatpush.msra.mxu0 0.0
    %300 = vmatpush.msra.mxu0 0.0
    %301 = vmatpush.msra.mxu0 0.0
    %302 = vmatpush.msra.mxu0 0.0
    %303 = vmatpush.msra.mxu0 0.0
    %304 = vmatpush.msra.mxu0 0.0
    %305 = vmatpush.msra.mxu0 0.0
    %306 = vmatpush.msra.mxu0 0.0
    %307 = vmatpush.msra.mxu0 0.0
    %308 = vmatpush.msra.mxu0 0.0
    %309 = vmatpush.msra.mxu0 %v292
    %310 = vmatmul.f32.gmra.mxu0 %v243
    %v311 = vpop.f32.mrf.mxu0
    %v312 = vadd.f32 0.0, %v311
    %313 = vmatmul.f32.gmra.mxu0 %v246
    %v314 = vpop.f32.mrf.mxu0
    %v315 = vadd.f32 0.0, %v314
    %316 = vmatmul.f32.gmra.mxu0 %v249
    %v317 = vpop.f32.mrf.mxu0
    %v318 = vadd.f32 0.0, %v317
    %319 = vmatmul.f32.gmra.mxu0 %v252
    %v320 = vpop.f32.mrf.mxu0
    %v321 = vadd.f32 0.0, %v320
    %322 = vmatmul.f32.gmra.mxu0 %v255
    %v323 = vpop.f32.mrf.mxu0
    %v324 = vadd.f32 0.0, %v323
    %325 = vmatmul.f32.gmra.mxu0 %v258
    %v326 = vpop.f32.mrf.mxu0
    %v327 = vadd.f32 0.0, %v326
    %328 = vmatmul.f32.gmra.mxu0 %v261
    %v329 = vpop.f32.mrf.mxu0
    %v330 = vadd.f32 0.0, %v329
    %331 = vmatmul.f32.gmra.mxu0 %v264
    %v332 = vpop.f32.mrf.mxu0
    %v333 = vadd.f32 0.0, %v332
    %334 = vmatmul.f32.gmra.mxu0 %v267
    %v335 = vpop.f32.mrf.mxu0
    %v336 = vadd.f32 0.0, %v335
    %337 = vmatmul.f32.gmra.mxu0 %v270
    %v338 = vpop.f32.mrf.mxu0
    %v339 = vadd.f32 0.0, %v338
    %340 = vmatmul.f32.gmra.mxu0 %v273
    %v341 = vpop.f32.mrf.mxu0
    %v342 = vadd.f32 0.0, %v341
    %343 = vmatmul.f32.gmra.mxu0 %v276
    %v344 = vpop.f32.mrf.mxu0
    %v345 = vadd.f32 0.0, %v344
    %346 = vmatmul.f32.gmra.mxu0 %v279
    %v347 = vpop.f32.mrf.mxu0
    %v348 = vadd.f32 0.0, %v347
    %349 = vmatmul.f32.gmra.mxu0 %v282
    %v350 = vpop.f32.mrf.mxu0
    %v351 = vadd.f32 0.0, %v350
    %352 = vmatmul.f32.gmra.mxu0 %v285
    %v353 = vpop.f32.mrf.mxu0
    %v354 = vadd.f32 0.0, %v353
    %355 = vmatmul.f32.gmra.mxu0 %v288
    %v356 = vpop.f32.mrf.mxu0
    %v357 = vadd.f32 0.0, %v356
    %358 = vdwg.mxu0
    %vm359 = vcmask 130048
    %v361 = vsel %vm359, %v108, 0
    %v364 = vsel %vm359, %v109, 0
    %v367 = vsel %vm359, %v110, 0
    %v370 = vsel %vm359, %v111, 0
    %v373 = vsel %vm359, %v112, 0
    %v376 = vsel %vm359, %v113, 0
    %v379 = vsel %vm359, %v114, 0
    %v382 = vsel %vm359, %v115, 0
    %v385 = vsel %vm359, %v116, 0
    %v388 = vsel %vm359, %v117, 0
    %v391 = vsel %vm359, %v118, 0
    %v394 = vsel %vm359, %v119, 0
    %v397 = vsel %vm359, %v120, 0
    %v400 = vsel %vm359, %v121, 0
    %v403 = vsel %vm359, %v122, 0
    %v406 = vsel %vm359, %v123, 0
    %408 = vmatpush.msra.mxu0 0.0
    %409 = vmatpush.msra.mxu0 0.0
    %410 = vmatpush.msra.mxu0 0.0
    %411 = vmatpush.msra.mxu0 0.0
    %412 = vmatpush.msra.mxu0 0.0
    %413 = vmatpush.msra.mxu0 0.0
    %414 = vmatpush.msra.mxu0 0.0
    %415 = vmatpush.msra.mxu0 0.0
    %416 = vmatpush.msra.mxu0 0.0
    %417 = vmatpush.msra.mxu0 0.0
    %418 = vmatpush.msra.mxu0 0.0
    %419 = vmatpush.msra.mxu0 0.0
    %420 = vmatpush.msra.mxu0 0.0
    %421 = vmatpush.msra.mxu0 0.0
    %422 = vmatpush.msra.mxu0 %v239
    %423 = vmatpush.msra.mxu0 %v238
    %424 = vmatmul.f32.gmra.mxu0 %v361
    %v425 = vpop.f32.mrf.mxu0
    %v426 = vadd.f32 %v312, %v425
    %427 = vmatmul.f32.gmra.mxu0 %v364
    %v428 = vpop.f32.mrf.mxu0
    %v429 = vadd.f32 %v315, %v428
    %430 = vmatmul.f32.gmra.mxu0 %v367
    %v431 = vpop.f32.mrf.mxu0
    %v432 = vadd.f32 %v318, %v431
    %433 = vmatmul.f32.gmra.mxu0 %v370
    %v434 = vpop.f32.mrf.mxu0
    %v435 = vadd.f32 %v321, %v434
    %436 = vmatmul.f32.gmra.mxu0 %v373
    %v437 = vpop.f32.mrf.mxu0
    %v438 = vadd.f32 %v324, %v437
    %439 = vmatmul.f32.gmra.mxu0 %v376
    %v440 = vpop.f32.mrf.mxu0
    %v441 = vadd.f32 %v327, %v440
    %442 = vmatmul.f32.gmra.mxu0 %v379
    %v443 = vpop.f32.mrf.mxu0
    %v444 = vadd.f32 %v330, %v443
    %445 = vmatmul.f32.gmra.mxu0 %v382
    %v446 = vpop.f32.mrf.mxu0
    %v447 = vadd.f32 %v333, %v446
    %448 = vmatmul.f32.gmra.mxu0 %v385
    %v449 = vpop.f32.mrf.mxu0
    %v450 = vadd.f32 %v336, %v449
    %451 = vmatmul.f32.gmra.mxu0 %v388
    %v452 = vpop.f32.mrf.mxu0
    %v453 = vadd.f32 %v339, %v452
    %454 = vmatmul.f32.gmra.mxu0 %v391
    %v455 = vpop.f32.mrf.mxu0
    %v456 = vadd.f32 %v342, %v455
    %457 = vmatmul.f32.gmra.mxu0 %v394
    %v458 = vpop.f32.mrf.mxu0
    %v459 = vadd.f32 %v345, %v458
    %460 = vmatmul.f32.gmra.mxu0 %v397
    %v461 = vpop.f32.mrf.mxu0
    %v462 = vadd.f32 %v348, %v461
    %463 = vmatmul.f32.gmra.mxu0 %v400
    %v464 = vpop.f32.mrf.mxu0
    %v465 = vadd.f32 %v351, %v464
    %466 = vmatmul.f32.gmra.mxu0 %v403
    %v467 = vpop.f32.mrf.mxu0
    %v468 = vadd.f32 %v354, %v467
    %469 = vmatmul.f32.gmra.mxu0 %v406
    %v470 = vpop.f32.mrf.mxu0
    %v471 = vadd.f32 %v357, %v470
    %472 = vdwg.mxu0
    %vm473 = vcmp.gt.f32.partialorder %v426, 0.0
    %vm474 = vcmp.gt.f32.partialorder %v429, 0.0
    %vm475 = vcmp.gt.f32.partialorder %v432, 0.0
    %vm476 = vcmp.gt.f32.partialorder %v435, 0.0
    %vm477 = vcmp.gt.f32.partialorder %v438, 0.0
    %vm478 = vcmp.gt.f32.partialorder %v441, 0.0
    %vm479 = vcmp.gt.f32.partialorder %v444, 0.0
    %vm480 = vcmp.gt.f32.partialorder %v447, 0.0
    %vm481 = vcmp.gt.f32.partialorder %v450, 0.0
    %vm482 = vcmp.gt.f32.partialorder %v453, 0.0
    %vm483 = vcmp.gt.f32.partialorder %v456, 0.0
    %vm484 = vcmp.gt.f32.partialorder %v459, 0.0
    %vm485 = vcmp.gt.f32.partialorder %v462, 0.0
    %vm486 = vcmp.gt.f32.partialorder %v465, 0.0
    %vm487 = vcmp.gt.f32.partialorder %v468, 0.0
    %vm488 = vcmp.gt.f32.partialorder %v471, 0.0
    %v489 = vmul.f32 %v426, 0.01
    %v490 = vmul.f32 %v429, 0.01
    %v491 = vmul.f32 %v432, 0.01
    %v492 = vmul.f32 %v435, 0.01
    %v493 = vmul.f32 %v438, 0.01
    %v494 = vmul.f32 %v441, 0.01
    %v495 = vmul.f32 %v444, 0.01
    %v496 = vmul.f32 %v447, 0.01
    %v497 = vmul.f32 %v450, 0.01
    %v498 = vmul.f32 %v453, 0.01
    %v499 = vmul.f32 %v456, 0.01
    %v500 = vmul.f32 %v459, 0.01
    %v501 = vmul.f32 %v462, 0.01
    %v502 = vmul.f32 %v465, 0.01
    %v503 = vmul.f32 %v468, 0.01
    %v504 = vmul.f32 %v471, 0.01
    %v505 = vsel %vm473, %v426, %v489
    %v506 = vsel %vm474, %v429, %v490
    %v507 = vsel %vm475, %v432, %v491
    %v508 = vsel %vm476, %v435, %v492
    %v509 = vsel %vm477, %v438, %v493
    %v510 = vsel %vm478, %v441, %v494
    %v511 = vsel %vm479, %v444, %v495
    %v512 = vsel %vm480, %v447, %v496
    %v513 = vsel %vm481, %v450, %v497
    %v514 = vsel %vm482, %v453, %v498
    %v515 = vsel %vm483, %v456, %v499
    %v516 = vsel %vm484, %v459, %v500
    %v517 = vsel %vm485, %v462, %v501
    %v518 = vsel %vm486, %v465, %v502
    %v519 = vsel %vm487, %v468, %v503
    %v520 = vsel %vm488, %v471, %v504
    %v521 = vld [vmem:[%s0] sm:$0x1]
    %v522 = vlaneseq
    %v523 = vshrl.u32 %v522, 7
    %v524 = vperm.slane %v521, 0
    %vm525 = vcmp.eq.s32.totalorder %v523, %v524
    %v526 = vld [vmem:[#allocation2] sm:$0x7]
    %vm527 = vcmask 523264
    %v529 = vsel %vm527, %v526, 0
    %v532 = vsel %vm527, %v505, 0
    %v535 = vsel %vm527, %v506, 0
    %v538 = vsel %vm527, %v507, 0
    %v541 = vsel %vm527, %v508, 0
    %v544 = vsel %vm527, %v509, 0
    %v547 = vsel %vm527, %v510, 0
    %v550 = vsel %vm527, %v511, 0
    %v553 = vsel %vm527, %v512, 0
    %v556 = vsel %vm527, %v513, 0
    %v559 = vsel %vm527, %v514, 0
    %v562 = vsel %vm527, %v515, 0
    %v565 = vsel %vm527, %v516, 0
    %v568 = vsel %vm527, %v517, 0
    %v571 = vsel %vm527, %v518, 0
    %v574 = vsel %vm527, %v519, 0
    %v577 = vsel %vm527, %v520, 0
    %579 = vmatpush.xpose.msra.mxu0 %v577
    %580 = vmatpush.xpose.msra.mxu0 %v574
    %581 = vmatpush.xpose.msra.mxu0 %v571
    %582 = vmatpush.xpose.msra.mxu0 %v568
    %583 = vmatpush.xpose.msra.mxu0 %v565
    %584 = vmatpush.xpose.msra.mxu0 %v562
    %585 = vmatpush.xpose.msra.mxu0 %v559
    %586 = vmatpush.xpose.msra.mxu0 %v556
    %587 = vmatpush.xpose.msra.mxu0 %v553
    %588 = vmatpush.xpose.msra.mxu0 %v550
    %589 = vmatpush.xpose.msra.mxu0 %v547
    %590 = vmatpush.xpose.msra.mxu0 %v544
    %591 = vmatpush.xpose.msra.mxu0 %v541
    %592 = vmatpush.xpose.msra.mxu0 %v538
    %593 = vmatpush.xpose.msra.mxu0 %v535
    %594 = vmatpush.xpose.msra.mxu0 %v532
    %595 = vmatmul.f32.gmra.mxu0 %v529
    %v596 = vpop.f32.mrf.mxu0
    %v597 = vadd.f32 0.0, %v596
    %598 = vdwg.mxu0
    %v599 = vsel %vm525, %v597, -1e+30
    %v600 = vld [vmem:[#allocation4] sm:$0x7]
    %v601 = vsel %vm290, %v599, -inf
    %602 = vmax.xlane.f32.xlu0 %v601
    %v603 = vpop.xlane.xlu0 %602
    %v604 = vmax.f32 %v600, %v603
    %v605 = vsub.f32 %v600, %v604
    %v606 = vmul.f32 %v605, 1.442695
    %v607 = vpow.pop %v606
    %609 = vset.pattern.permute.xlu0 0
    %610 = vperm.xlu0 %609, %v604
    %v611 = vpop.permute.xlu0 %610
    %v613 = vsub.f32 %v599, %v611
    %v614 = vmul.f32 %v613, 1.442695
    %v615 = vpow.pop %v614
    %v616 = vsel %vm525, %v615, 0.0
    %v617 = vld [vmem:[#allocation5] sm:$0x7]
    %v618 = vmul.f32 %v607, %v617
    %v619 = vsel %vm290, %v616, 0.0
    %620 = vadd.xlane.f32.xlu0 %v619
    %v621 = vpop.xlane.xlu0 %620
    %v622 = vadd.f32 %v618, %v621
    %vm623 = vcmask 2048
    %624 = vst.msk [vmem:[#allocation5] sm:$0x7] %vm623, %v622
    %v625 = vld [vmem:[#allocation6] sm:$0x7]
    %627 = vset.pattern.permute.xlu0 0
    %628 = vperm.xlu0 %627, %v607
    %v629 = vpop.permute.xlu0 %628
    %v631 = vmul.f32 %v629, %v625
    %632 = vmatpush.msra.mxu0 %v520
    %633 = vmatpush.msra.mxu0 %v519
    %634 = vmatpush.msra.mxu0 %v518
    %635 = vmatpush.msra.mxu0 %v517
    %636 = vmatpush.msra.mxu0 %v516
    %637 = vmatpush.msra.mxu0 %v515
    %638 = vmatpush.msra.mxu0 %v514
    %639 = vmatpush.msra.mxu0 %v513
    %640 = vmatpush.msra.mxu0 %v512
    %641 = vmatpush.msra.mxu0 %v511
    %642 = vmatpush.msra.mxu0 %v510
    %643 = vmatpush.msra.mxu0 %v509
    %644 = vmatpush.msra.mxu0 %v508
    %645 = vmatpush.msra.mxu0 %v507
    %646 = vmatpush.msra.mxu0 %v506
    %647 = vmatpush.msra.mxu0 %v505
    %648 = vmatmul.f32.gmra.mxu0 %v616
    %v649 = vpop.f32.mrf.mxu0
    %v650 = vadd.f32 0.0, %v649
    %651 = vdwg.mxu0
    %v652 = vadd.f32 %v631, %v650
    %vm653 = vcmask 518144
    %654 = vst.msk [vmem:[#allocation6] sm:$0x7] %vm653, %v652
    %655 = vst.msk [vmem:[#allocation4] sm:$0x7] %vm623, %v604
    // Predicated region
    $region50: #{tpu_custom_call.1} parent=1 // pred_check
      %p656 = pneg %p39
    $region51: #{tpu_custom_call.1} parent=1 // pred_check_branch
      %658 = sbr.rel (%p656) target = $region53
    $region52: #{tpu_custom_call.1} parent=1 // pred_region
      %v659 = vld [vmem:[#allocation5] sm:$0x7]
      %vm660 = vcmp.gt.f32.partialorder %v659, 0.0
      %v661 = vsel %vm660, %v659, 1.0
      %v662 = vld [vmem:[#allocation6] sm:$0x7]
      %664 = vset.pattern.permute.xlu0 0
      %665 = vperm.xlu0 %664, %v661
      %v666 = vpop.permute.xlu0 %665
      %v668 = vrcp.pop %v666
      %v669 = vmul.f32 %v666, %v668
      %v670 = vsub.f32 1.0, %v669
      %v671 = vmul.f32 %v668, %v670
      %v672 = vadd.f32 %v668, %v671
      %vm673 = vweird.f32 %v666
      %vm674 = vweird.f32 %v668
      %vm675 = vmor %vm673, %vm674
      %v676 = vsel %vm675, %v668, %v672
      %v677 = vand.u32 2147483647, %v666
      %vm678 = vcmp.eq.f32.partialorder %v677, 8.507059e+37
      %v679 = vand.u32 %v666, 2147483648
      %v680 = vor.u32 1.1754944e-38, %v679
      %v681 = vsel %vm678, %v680, %v676
      %v682 = vmul.f32 %v662, %v681
      %v683 = vld [vmem:[%s9] sm:$0xff]
      %v684 = vld [vmem:[%s9 + $0x8] sm:$0xff]
      %v685 = vld [vmem:[%s9 + $0x10] sm:$0xff]
      %v686 = vld [vmem:[%s9 + $0x18] sm:$0xff]
      %v687 = vld [vmem:[%s9 + $0x20] sm:$0xff]
      %v688 = vld [vmem:[%s9 + $0x28] sm:$0xff]
      %v689 = vld [vmem:[%s9 + $0x30] sm:$0xff]
      %v690 = vld [vmem:[%s9 + $0x38] sm:$0xff]
      %v691 = vld [vmem:[%s10] sm:$0x1]
      %v693 = vperm.slane %v691, 0
      %v696 = vsel %vm527, %v682, 0
      %698 = vmatpush.msra.mxu0 0.0
      %699 = vmatpush.msra.mxu0 0.0
      %700 = vmatpush.msra.mxu0 0.0
      %701 = vmatpush.msra.mxu0 0.0
      %702 = vmatpush.msra.mxu0 0.0
      %703 = vmatpush.msra.mxu0 0.0
      %704 = vmatpush.msra.mxu0 0.0
      %705 = vmatpush.msra.mxu0 0.0
      %706 = vmatpush.msra.mxu0 %v690
      %707 = vmatpush.msra.mxu0 %v689
      %708 = vmatpush.msra.mxu0 %v688
      %709 = vmatpush.msra.mxu0 %v687
      %710 = vmatpush.msra.mxu0 %v686
      %711 = vmatpush.msra.mxu0 %v685
      %712 = vmatpush.msra.mxu0 %v684
      %713 = vmatpush.msra.mxu0 %v683
      %714 = vmatmul.f32.gmra.mxu0 %v696
      %v715 = vpop.f32.mrf.mxu0
      %v716 = vadd.f32 %v693, %v715
      %717 = vdwg.mxu0
      %vm718 = vcmp.gt.f32.partialorder %v716, 0.0
      %v719 = vmul.f32 %v716, 0.01
      %v720 = vsel %vm718, %v716, %v719
      %vm721 = vcmask 124928
      %722 = vst.msk [vmem:[#allocation7] sm:$0x7] %vm721, %v720
    $region53: #{tpu_custom_call.1} parent=1 // pred_fallthru
      _
    // Predicated region
    $region54: #{tpu_custom_call.1} parent=1 // pred_check
      _
    $region55: #{tpu_custom_call.1} parent=1 // pred_check_branch
      %724 = sbr.rel (0) target = $region57
    $region56: #{tpu_custom_call.1} parent=1 // pred_region
      %726 = vsyncadd [#allocation8], 0
      %s728 = sshll.u32 [#allocation7], 4
      %s729 = int_to_ptr.vmem [resolvable:$true] %s728
      %s730 = sshll.u32 %s11, 4
      %s731 = int_to_ptr.hbm [resolvable:$true] %s730
      %733 = dma.vmem_to_hbm [thread:$0]  %s729, 64, %s731, [#allocation8]
    $region57: #{tpu_custom_call.1} parent=1 // pred_fallthru
      _
    // Predicated region
    $region58: #{tpu_custom_call.1} parent=1 // pred_check
      _
    $region59: #{tpu_custom_call.1} parent=1 // pred_check_branch
      %735 = sbr.rel (0) target = $region61
    $region60: #{tpu_custom_call.1} parent=1 // pred_region
      %737 = dma.done [#allocation8], 64
    $region61: #{tpu_custom_call.1} parent=1 // pred_fallthru
      _
    %738 = vsyncpa [#allocation8], 1

</llo_original>
